<compile_context>
chip_gen: v7x
topology: tpu7x:2x2x1
jax: 0.10.0
libtpu: 0.0.40
codegen_flags: <defaults>
</compile_context>

<pallas_src>
import functools

import jax
import jax.numpy as jnp
from jax import lax
from jax.experimental import pallas as pl
from jax.experimental.pallas import tpu as pltpu


def _round_up(x, m):
    return ((x + m - 1) // m) * m


def _largest_aligned_divisor(n, target, align):
    """Largest multiple of `align` that divides `n` and is <= max(target, align).

    `n` must itself be a multiple of `align`.
    """
    target = max(target, align)
    best = align
    d = align
    limit = min(target, n)
    while d <= limit:
        if n % d == 0:
            best = d
        d += align
    return best


def bow_kernel(x_ref, w_ref, b_ref, o_ref, *, num_labels):
    """One (batch-tile i, vocab-tile k) grid step.

    x_ref: [tb, tv]  f32   bag-of-words counts (straight from HBM, no repack)
    w_ref: [tv, Lp]  bf16  pre-transposed weight (zero-padded on V and L)
    b_ref: [1,  Lp]  f32   bias (zero-padded on L)
    o_ref: [tb, Lp]  f32   resident across k: accumulator, then log-probs
    """
    k = pl.program_id(1)

    @pl.when(k == 0)
    def _():
        o_ref[...] = jnp.zeros_like(o_ref)

    # Cast the f32 tile to bf16 on the VPU (free under the DMA shadow) and
    # feed the MXU directly; accumulate in f32 into the resident output block.
    x = x_ref[...].astype(jnp.bfloat16)
    o_ref[...] += jnp.dot(x, w_ref[...], preferred_element_type=jnp.float32)

    @pl.when(k == pl.num_programs(1) - 1)
    def _():
        logits = o_ref[...] + b_ref[...]
        # Mask padded label lanes to -inf so they don't affect log_softmax.
        lane = lax.broadcasted_iota(jnp.int32, logits.shape, 1)
        logits = jnp.where(lane < num_labels, logits, -jnp.inf)

        m = jnp.max(logits, axis=1, keepdims=True)
        shifted = logits - m
        lse = jnp.log(jnp.sum(jnp.exp(shifted), axis=1, keepdims=True))
        o_ref[...] = shifted - lse


def bow_classifier_forward(bow_vec, weight, bias, *, tb=512, tv=4096):
    """Forward pass of BoWClassifier.

    bow_vec: [B, V] f32, weight: [L, V] f32, bias: [L] f32 -> [B, L] f32
    """
    B, V = bow_vec.shape
    L, V_w = weight.shape
    assert V_w == V, "weight must be [num_labels, vocab_size]"

    L_pad = _round_up(L, 128)

    # ---- Batch tiling (second-to-last dim: multiple of 8, or full dim). ----
    B_pad = B if B % 8 == 0 else _round_up(B, 8)
    # Keep >= 2 batch tiles when the batch is big enough: the "parallel" axis
    # is what feeds both TensorCores on v7x megacore.
    target_tb = min(tb, B_pad if B_pad < 16 else max(8, B_pad // 2))
    tb_eff = _largest_aligned_divisor(B_pad, target_tb, 8)

    # ---- Vocab tiling (last dim: multiple of 128, or full dim). ----
    if V % 128 == 0:
        tv_eff = _largest_aligned_divisor(V, min(tv, V), 128)
        V_pad = V
    elif tb_eff * V * 4 <= (4 << 20):
        # Small, non-128-aligned vocab: a single full-width block is legal
        # (block last-dim == full array dim) and avoids any repack of x.
        tv_eff = V
        V_pad = V
    else:
        # TODO(synk): a large vocab that is not a multiple of 128 forces one
        # zero-pad copy of x; supply a 128-aligned vocab to avoid it.
        V_pad = _round_up(V, 128)
        tv_eff = _largest_aligned_divisor(V_pad, min(tv, V_pad), 128)

    # ---- Inputs: pad x only if genuinely required. ----
    x = bow_vec if bow_vec.dtype == jnp.float32 else bow_vec.astype(jnp.float32)
    if (B_pad, V_pad) != (B, V):
        x = jnp.zeros((B_pad, V_pad), jnp.float32).at[:B, :V].set(x)

    # Weight transpose/pad is O(L*V) (tiny vs. x).  NOTE: for inference this
    # should be computed once and cached by the caller.
    w_t = jnp.zeros((V_pad, L_pad), jnp.bfloat16).at[:V, :L].set(
        weight.T.astype(jnp.bfloat16))
    b2 = jnp.zeros((1, L_pad), jnp.float32).at[0, :L].set(
        bias.astype(jnp.float32))

    grid = (B_pad // tb_eff, V_pad // tv_eff)

    # Explicit VMEM budget: double-buffered x + W^T tiles, resident output,
    # bias.  v5e's scoped default (16 MiB) is too small at the default tiles.
    x_tile = tb_eff * tv_eff * 4
    w_tile = tv_eff * L_pad * 2
    o_tile = tb_eff * L_pad * 4
    vmem_bytes = 2 * x_tile + 2 * w_tile + 2 * o_tile + 2 * L_pad * 4
    vmem_limit = max(32 * 1024 * 1024, min(2 * vmem_bytes, 120 * 1024 * 1024))

    out_padded = pl.pallas_call(
        functools.partial(bow_kernel, num_labels=L),
        out_shape=jax.ShapeDtypeStruct((B_pad, L_pad), jnp.float32),
        grid_spec=pltpu.PrefetchScalarGridSpec(
            num_scalar_prefetch=0,
            grid=grid,
            in_specs=[
                pl.BlockSpec((tb_eff, tv_eff), lambda i, k: (i, k)),   # x
                pl.BlockSpec((tv_eff, L_pad), lambda i, k: (k, 0)),    # W^T
                pl.BlockSpec((1, L_pad), lambda i, k: (0, 0)),         # bias
            ],
            out_specs=pl.BlockSpec((tb_eff, L_pad), lambda i, k: (i, 0)),
        ),
        compiler_params=pltpu.CompilerParams(
            dimension_semantics=("parallel", "arbitrary"),
            vmem_limit_bytes=int(vmem_limit),
        ),
    )(x, w_t, b2)

    return out_padded[:B, :L]


def reference_forward(bow_vec, weight, bias):
    # Reference at the kernel's operand precision (bf16 MXU operands, f32
    # accumulation); bf16-rounded values are exact in f32, so only the
    # accumulation order differs.
    x = bow_vec.astype(jnp.bfloat16).astype(jnp.float32)
    w = weight.astype(jnp.bfloat16).astype(jnp.float32)
    logits = jnp.dot(x, w.T, precision=jax.lax.Precision.HIGHEST) + bias.astype(
        jnp.float32)
    return jax.nn.log_softmax(logits, axis=1)


if __name__ == "__main__":
    key = jax.random.PRNGKey(0)
    k_x, k_w, k_b = jax.random.split(key, 3)

    batch = 16
    vocab_size = 256
    num_labels = 4

    # Deterministic "parameters" (nn.Linear(vocab_size, num_labels) shapes).
    bound = 1.0 / (vocab_size ** 0.5)
    weight = jax.random.uniform(
        k_w, (num_labels, vocab_size), jnp.float32, -bound, bound)
    bias = jax.random.uniform(k_b, (num_labels,), jnp.float32, -bound, bound)

    # Bag-of-words count vectors (integers 0..4: exact in bf16).
    bow_vec = jax.random.randint(
        k_x, (batch, vocab_size), 0, 5).astype(jnp.float32)

    ref = reference_forward(bow_vec, weight, bias)

    # 1) Default tiles (derived down to the demo shapes; 2 batch tiles).
    out = bow_classifier_forward(bow_vec, weight, bias)
    out = jax.block_until_ready(out)
    assert out.shape == (batch, num_labels)
    assert jnp.allclose(out, ref, atol=1e-4, rtol=1e-4), (
        float(jnp.max(jnp.abs(out - ref))))

    # 2) Force a multi-tile grid (2 batch x 2 vocab tiles) to exercise the
    #    resident-output accumulation across the reduction axis.
    out2 = bow_classifier_forward(bow_vec, weight, bias, tb=8, tv=128)
    out2 = jax.block_until_ready(out2)
    assert jnp.allclose(out2, ref, atol=1e-4, rtol=1e-4), (
        float(jnp.max(jnp.abs(out2 - ref))))

    # 3) Non-aligned shapes (batch pad path + full-width vocab block path).
    bow3 = bow_vec[:10, :100]
    w3 = weight[:, :100]
    out3 = bow_classifier_forward(bow3, w3, bias)
    out3 = jax.block_until_ready(out3)
    ref3 = reference_forward(bow3, w3, bias)
    assert out3.shape == (10, num_labels)
    assert jnp.allclose(out3, ref3, atol=1e-4, rtol=1e-4), (
        float(jnp.max(jnp.abs(out3 - ref3))))

    print("KERNEL_OK")
</pallas_src>

<mosaic_0001>
module attributes {stable_mosaic.version = 11 : i64} {
  func.func @bow_kernel(%arg0: i32, %arg1: i32, %arg2: memref<8x256xf32, #tpu.memory_space<vmem>>, %arg3: memref<256x128xbf16, #tpu.memory_space<vmem>>, %arg4: memref<1x128xf32, #tpu.memory_space<vmem>>, %arg5: memref<8x128xf32, #tpu.memory_space<vmem>>) attributes {dimension_semantics = [#tpu.dimension_semantics<parallel>, #tpu.dimension_semantics<arbitrary>], iteration_bounds = array<i64: 2, 1>, scalar_prefetch = 0 : i64, scratch_operands = 0 : i64, tpu.core_type = #tpu.core_type<tc>, window_params = [{transform_indices = @transform_0, window_bounds = array<i64: 8, 256>}, {transform_indices = @transform_1, window_bounds = array<i64: 256, 128>}, {pipeline_mode = #tpu.pipeline_mode<synchronous>, transform_indices = @transform_2, window_bounds = array<i64: 1, 128>}, {transform_indices = @transform_3, window_bounds = array<i64: 8, 128>}]} {
    %c0_i32 = arith.constant 0 : i32
    %0 = arith.cmpi eq, %arg1, %c0_i32 : i32
    %1 = arith.extui %0 : i1 to i32
    %c0_i32_0 = arith.constant 0 : i32
    %2 = arith.cmpi ne, %1, %c0_i32_0 : i32
    scf.if %2 {
      %cst_10 = arith.constant 0.000000e+00 : f32
      %13 = vector.broadcast %cst_10 : f32 to vector<8x128xf32>
      %c0_11 = arith.constant 0 : index
      %c0_12 = arith.constant 0 : index
      %14 = vector.load %arg5[%c0_11, %c0_12] : memref<8x128xf32, #tpu.memory_space<vmem>>, vector<8x128xf32>
      tpu.vector_store %arg5[%c0_11, %c0_12], %13 {strides = array<i32>} : memref<8x128xf32, #tpu.memory_space<vmem>>, vector<8x128xf32>,
    } else {
    }
    %c0 = arith.constant 0 : index
    %c0_1 = arith.constant 0 : index
    %3 = vector.load %arg2[%c0, %c0_1] : memref<8x256xf32, #tpu.memory_space<vmem>>, vector<8x256xf32>
    %4 = arith.truncf %3 : vector<8x256xf32> to vector<8x256xbf16>
    %c0_2 = arith.constant 0 : index
    %c0_3 = arith.constant 0 : index
    %5 = vector.load %arg5[%c0_2, %c0_3] : memref<8x128xf32, #tpu.memory_space<vmem>>, vector<8x128xf32>
    %c0_4 = arith.constant 0 : index
    %c0_5 = arith.constant 0 : index
    %6 = vector.load %arg3[%c0_4, %c0_5] : memref<256x128xbf16, #tpu.memory_space<vmem>>, vector<256x128xbf16>
    %cst = arith.constant dense<0.000000e+00> : vector<8x128xf32>
    %7 = tpu.matmul %4, %6, %cst {dimension_numbers = #tpu.dot_dimension_numbers<[1], [0], [0], [1], [0, 0, 1, 1], [], []>} : vector<8x256xbf16>, vector<256x128xbf16>, vector<8x128xf32> -> vector<8x128xf32>
    %8 = arith.addf %5, %7 : vector<8x128xf32>
    %c0_6 = arith.constant 0 : index
    %c0_7 = arith.constant 0 : index
    %9 = vector.load %arg5[%c0_6, %c0_7] : memref<8x128xf32, #tpu.memory_space<vmem>>, vector<8x128xf32>
    tpu.vector_store %arg5[%c0_6, %c0_7], %8 {strides = array<i32>} : memref<8x128xf32, #tpu.memory_space<vmem>>, vector<8x128xf32>,
    %c0_i32_8 = arith.constant 0 : i32
    %10 = arith.cmpi eq, %arg1, %c0_i32_8 : i32
    %11 = arith.extui %10 : i1 to i32
    %c0_i32_9 = arith.constant 0 : i32
    %12 = arith.cmpi ne, %11, %c0_i32_9 : i32
    scf.if %12 {
      %c0_10 = arith.constant 0 : index
      %c0_11 = arith.constant 0 : index
      %13 = vector.load %arg5[%c0_10, %c0_11] : memref<8x128xf32, #tpu.memory_space<vmem>>, vector<8x128xf32>
      %c0_12 = arith.constant 0 : index
      %c0_13 = arith.constant 0 : index
      %14 = vector.load %arg4[%c0_12, %c0_13] : memref<1x128xf32, #tpu.memory_space<vmem>>, vector<1x128xf32>
      %15 = vector.broadcast %14 : vector<1x128xf32> to vector<8x128xf32>
      %16 = arith.addf %13, %15 : vector<8x128xf32>
      %17 = tpu.iota {dimensions = array<i32: 1>} : vector<8x128xi32>
      %c4_i32 = arith.constant 4 : i32
      %18 = vector.broadcast %c4_i32 : i32 to vector<8x128xi32>
      %19 = arith.cmpi slt, %17, %18 : vector<8x128xi32>
      %cst_14 = arith.constant 0xFF800000 : f32
      %20 = vector.broadcast %cst_14 : f32 to vector<8x128xf32>
      %21 = arith.select %19, %16, %20 : vector<8x128xi1>, vector<8x128xf32>
      %cst_15 = arith.constant dense<0xFF800000> : vector<8xf32>
      %22 = vector.multi_reduction <maximumf>, %21, %cst_15 [1] : vector<8x128xf32> to vector<8xf32>
      %23 = vector.shape_cast %22 : vector<8xf32> to vector<8x1xf32>
      %24 = vector.broadcast %23 : vector<8x1xf32> to vector<8x128xf32>
      %25 = arith.subf %21, %24 : vector<8x128xf32>
      %26 = math.exp %25 : vector<8x128xf32>
      %cst_16 = arith.constant dense<0.000000e+00> : vector<8xf32>
      %27 = vector.multi_reduction <add>, %26, %cst_16 [1] : vector<8x128xf32> to vector<8xf32>
      %28 = vector.shape_cast %27 : vector<8xf32> to vector<8x1xf32>
      %29 = math.log %28 : vector<8x1xf32>
      %30 = vector.broadcast %29 : vector<8x1xf32> to vector<8x128xf32>
      %31 = arith.subf %25, %30 : vector<8x128xf32>
      %c0_17 = arith.constant 0 : index
      %c0_18 = arith.constant 0 : index
      %32 = vector.load %arg5[%c0_17, %c0_18] : memref<8x128xf32, #tpu.memory_space<vmem>>, vector<8x128xf32>
      tpu.vector_store %arg5[%c0_17, %c0_18], %31 {strides = array<i32>} : memref<8x128xf32, #tpu.memory_space<vmem>>, vector<8x128xf32>,
    } else {
    }
    return
  }
  func.func @transform_0(%arg0: i32, %arg1: i32) -> (i32, i32) {
    %c0_i32 = arith.constant 0 : i32
    return %arg0, %arg1 : i32, i32
  }
  func.func @transform_1(%arg0: i32, %arg1: i32) -> (i32, i32) {
    %c0_i32 = arith.constant 0 : i32
    %c0_i32_0 = arith.constant 0 : i32
    return %arg1, %c0_i32 : i32, i32
  }
  func.func @transform_2(%arg0: i32, %arg1: i32) -> (i32, i32) {
    %c0_i32 = arith.constant 0 : i32
    %c0_i32_0 = arith.constant 0 : i32
    %c0_i32_1 = arith.constant 0 : i32
    return %c0_i32, %c0_i32_0 : i32, i32
  }
  func.func @transform_3(%arg0: i32, %arg1: i32) -> (i32, i32) {
    %c0_i32 = arith.constant 0 : i32
    %c0_i32_0 = arith.constant 0 : i32
    return %arg0, %c0_i32 : i32, i32
  }
}

</mosaic_0001>

<llo_original>
// kernel: tpu_custom_call.1
$region0: #{tpu_custom_call.1}
  #allocation0 [shape = 'u32[]', space=smem, size = 0x4, offset = 0x4, fixed_abs, tag = 'smem constant byte address 0x4 - core index']
  #allocation1 [shape = 'u32[144,128]{1,0:T(1,128)}', space=vmem, size = 0x12000, scoped, tag = 'internal scratch']
  %s0 = inlined_call_operand.hbm [shape: f32[16,256], index: 0, kind: input, shape index: {}]
  %s1 = inlined_call_operand.hbm [shape: bf16[256,128], index: 1, kind: input, shape index: {}]
  %s2 = inlined_call_operand.vmem [shape: f32[1,128], index: 2, kind: input, shape index: {}]
  %s3 = inlined_call_operand.hbm [shape: f32[16,128], index: 3, kind: output, shape index: {}]
  %s4 = sld [smem:[#allocation0]]
  $region61: #{tpu_custom_call.1} parent=0
    _
  %s6 = ssub.s32 1, %s4
  %s7 = scalar_select 0, %s6, %s4
  $region1: #{tpu_custom_call.1} parent=0
    #allocation2 [shape = 'u8[16384]{0}', space=vmem, size = 0x4000, scoped, tag = 'input window, operand 0']
    #allocation3 [shape = 's32[2]{0}', space=sflag, size = 0x8, scoped, tag = 'scoped memory for tpu_custom_call.1']
    #allocation4 [shape = 's32[2]{0}', space=sflag, size = 0x8, scoped, tag = 'scoped memory for tpu_custom_call.1']
    #allocation5 [shape = 'u8[65536]{0}', space=vmem, size = 0x10000, scoped, tag = 'input window, operand 1, single buffered']
    #allocation6 [shape = 's32[1]{0}', space=sflag, size = 0x4, scoped, tag = 'scoped memory for tpu_custom_call.1']
    #allocation7 [shape = 'u8[8192]{0}', space=vmem, size = 0x2000, scoped, tag = 'output window, operand 0']
    %8 = vsyncpa [#allocation3], 0
    %s9 = scalar_lea.sflag [#allocation3], 1
    %10 = vsyncpa %s9, 0
    %11 = vsyncpa [#allocation6], 0
    %12 = vsyncpa [#allocation4], 0
    %s13 = scalar_lea.sflag [#allocation4], 1
    %14 = vsyncpa %s13, 0
    loop: start=0, step=1, limit=4
    $region2: #{tpu_custom_call.1} parent=1 // loop_pre_header
      _
    $region3: #{tpu_custom_call.1} parent=1 // loop_header
      %s16 = sphi 0, %s20
      %p17 = scmp.ge.s32.totalorder %s16, 4
      %s23 = sphi 0, %s35
      %s24 = sphi 0, %s31
      %s25 = sphi 0, %s23
      %s26 = sphi 0, %s24
      %s27 = sphi 0, %s25
      %s28 = sphi 0, %s26
      %s40 = sphi 0, %s42
      %s43 = sphi 0, %s40
      %s44 = sphi 0, %s43
      %s60 = sphi 0, %s44
      %s66 = sphi 0, %s68
      %s69 = sphi 0, %s66
      %s70 = sphi 0, %s69
      %s86 = sphi 0, %s70
      %s90 = sphi 0, %s90
      %s92 = sphi 0, %s90
      %s93 = sphi 0, %s92
      %s107 = sphi 0, %s93
      %s113 = sphi 0, %s115
      %s116 = sphi 0, %s113
      %s117 = sphi 0, %s116
      %s133 = sphi 0, %s117
    $region4: #{tpu_custom_call.1} parent=1 // loop_header_branch
      %19 = sbr.rel (%p17) target = $region8
    $region5: #{tpu_custom_call.1} parent=1 // loop_body
      %s21 = ssub.s32 %s16, 1
      %s22 = ssub.s32 %s16, 2
      %s29 = sadd.s32 1, %s24
      %p30 = scmp.ge.s32.totalorder %s29, 1
      %s31 = scalar_select %p30, 0, %s29
      %s32 = sadd.s32 1, %s23
      %s33 = scalar_select %p30, %s32, %s23
      %p34 = scmp.ge.s32.totalorder %s33, 2
      %s35 = scalar_select %p34, 0, %s33
      %s36 = ssub.s32 %s23, %s35
      %s37 = ssub.s32 %s24, %s31
      %s38 = sor.u32 %s36, %s37
      %p39 = scmp.eq.s32.totalorder %s38, 0
      %s41 = sadd.s32 %s40, 1
      %s42 = scalar_select %p39, %s40, %s41
      %p45 = pneg %p39
      %p46 = scmp.eq.s32.totalorder %s16, 1
      %p47 = por %p45, %p46
      %p48 = scmp.ne.s32.totalorder %s40, %s43
      %p49 = scmp.eq.s32.totalorder %s16, 0
      %p50 = por %p48, %p49
      %p51 = scmp.ne.s32.totalorder %s40, %s43
      %p52 = scmp.eq.s32.totalorder %s21, 1
      %p53 = por %p51, %p52
      %p54 = scmp.ne.s32.totalorder %s43, %s44
      %p55 = scmp.eq.s32.totalorder %s21, 0
      %p56 = por %p54, %p55
      %p57 = scmp.ne.s32.totalorder %s43, %s44
      %p58 = scmp.eq.s32.totalorder %s22, 1
      %p59 = por %p57, %p58
      %p61 = scmp.ne.s32.totalorder %s44, %s60
      %p62 = scmp.eq.s32.totalorder %s22, 0
      %p63 = por %p61, %p62
      %s64 = ssub.s32 %s24, %s31
      %p65 = scmp.eq.s32.totalorder %s64, 0
      %s67 = sadd.s32 %s66, 1
      %s68 = scalar_select %p65, %s66, %s67
      %p71 = pneg %p65
      %p72 = scmp.eq.s32.totalorder %s16, 1
      %p73 = por %p71, %p72
      %p74 = scmp.ne.s32.totalorder %s66, %s69
      %p75 = scmp.eq.s32.totalorder %s16, 0
      %p76 = por %p74, %p75
      %p77 = scmp.ne.s32.totalorder %s66, %s69
      %p78 = scmp.eq.s32.totalorder %s21, 1
      %p79 = por %p77, %p78
      %p80 = scmp.ne.s32.totalorder %s69, %s70
      %p81 = scmp.eq.s32.totalorder %s21, 0
      %p82 = por %p80, %p81
      %p83 = scmp.ne.s32.totalorder %s69, %s70
      %p84 = scmp.eq.s32.totalorder %s22, 1
      %p85 = por %p83, %p84
      %p87 = scmp.ne.s32.totalorder %s70, %s86
      %p88 = scmp.eq.s32.totalorder %s22, 0
      %p89 = por %p87, %p88
      %s91 = sadd.s32 %s90, 1
      %p94 = scmp.eq.s32.totalorder %s16, 1
      %p95 = scmp.ne.s32.totalorder %s90, %s92
      %p96 = scmp.eq.s32.totalorder %s16, 0
      %p97 = por %p95, %p96
      %p98 = scmp.ne.s32.totalorder %s90, %s92
      %p99 = scmp.eq.s32.totalorder %s21, 1
      %p100 = por %p98, %p99
      %p101 = scmp.ne.s32.totalorder %s92, %s93
      %p102 = scmp.eq.s32.totalorder %s21, 0
      %p103 = por %p101, %p102
      %p104 = scmp.ne.s32.totalorder %s92, %s93
      %p105 = scmp.eq.s32.totalorder %s22, 1
      %p106 = por %p104, %p105
      %p108 = scmp.ne.s32.totalorder %s93, %s107
      %p109 = scmp.eq.s32.totalorder %s22, 0
      %p110 = por %p108, %p109
      %s111 = ssub.s32 %s23, %s35
      %p112 = scmp.eq.s32.totalorder %s111, 0
      %s114 = sadd.s32 %s113, 1
      %s115 = scalar_select %p112, %s113, %s114
      %p118 = pneg %p112
      %p119 = scmp.eq.s32.totalorder %s16, 1
      %p120 = por %p118, %p119
      %p121 = scmp.ne.s32.totalorder %s113, %s116
      %p122 = scmp.eq.s32.totalorder %s16, 0
      %p123 = por %p121, %p122
      %p124 = scmp.ne.s32.totalorder %s113, %s116
      %p125 = scmp.eq.s32.totalorder %s21, 1
      %p126 = por %p124, %p125
      %p127 = scmp.ne.s32.totalorder %s116, %s117
      %p128 = scmp.eq.s32.totalorder %s21, 0
      %p129 = por %p127, %p128
      %p130 = scmp.ne.s32.totalorder %s116, %s117
      %p131 = scmp.eq.s32.totalorder %s22, 1
      %p132 = por %p130, %p131
      %p134 = scmp.ne.s32.totalorder %s117, %s133
      %p135 = scmp.eq.s32.totalorder %s22, 0
      %p136 = por %p134, %p135
      %p137 = scmp.le.s32.totalorder 1, %s16
      %p138 = scmp.lt.s32.totalorder %s16, 3
      %p139 = pnand %p137, %p138
      %p140 = pneg %p139
      // Predicated region
      $region9: #{tpu_custom_call.1} parent=5 // pred_check
        _
      $region10: #{tpu_custom_call.1} parent=5 // pred_check_branch
        %142 = sbr.rel (%p139) target = $region12
      $region11: #{tpu_custom_call.1} parent=5 // pred_region
        %s143 = ssub.s32 %s16, 1
        // Predicated region
        $region13: #{tpu_custom_call.1} parent=11 // pred_check
          %p144 = pneg %p82
        $region14: #{tpu_custom_call.1} parent=11 // pred_check_branch
          %146 = sbr.rel (%p144) target = $region16
        $region15: #{tpu_custom_call.1} parent=11 // pred_region
          %s147 = smul.u32 32, %s26
          %s149 = ssub.s32 2048, 2048
          %150 = vsyncadd [#allocation6], %s149
          %s151 = smul.addr %s147, 64
          %s152 = scalar_lea.hbm %s1, %s151
          %s153 = sshll.u32 [#allocation5], 4
          %s154 = int_to_ptr.vmem [resolvable:$true] %s153
          %159 = dma.hbm_to_vmem [thread:$0]  %s152, 2048, %s154, [#allocation6], 64, 64, 4
        $region16: #{tpu_custom_call.1} parent=11 // pred_fallthru
          _
        // Predicated region
        $region17: #{tpu_custom_call.1} parent=11 // pred_check
          %p160 = pneg %p103
        $region18: #{tpu_custom_call.1} parent=11 // pred_check_branch
          %162 = sbr.rel (%p160) target = $region20
        $region19: #{tpu_custom_call.1} parent=11 // pred_region
          _
        $region20: #{tpu_custom_call.1} parent=11 // pred_fallthru
          _
      $region12: #{tpu_custom_call.1} parent=5 // pred_fallthru
        _
      %p163 = scmp.lt.s32.totalorder %s16, 2
      // Predicated region
      $region21: #{tpu_custom_call.1} parent=5 // pred_check
        %p164 = pneg %p163
      $region22: #{tpu_custom_call.1} parent=5 // pred_check_branch
        %166 = sbr.rel (%p164) target = $region24
      $region23: #{tpu_custom_call.1} parent=5 // pred_region
        // Predicated region
        $region25: #{tpu_custom_call.1} parent=23 // pred_check
          %p167 = pneg %p50
        $region26: #{tpu_custom_call.1} parent=23 // pred_check_branch
          %169 = sbr.rel (%p167) target = $region28
        $region27: #{tpu_custom_call.1} parent=23 // pred_region
          %s170 = sand.u32 %s40, 1
          %s171 = scalar_lea.sflag [#allocation3], %s170
          %s172 = sand.u32 %s40, 1
          %s173 = smul.addr %s172, 16
          %s174 = scalar_lea.vmem [#allocation2], %s173
          %s175 = smul.u32 2, %s24
          %s177 = ssub.s32 256, 256
          %178 = vsyncadd %s171, %s177
          %s179 = smul.addr %s23, 2
          %s180 = sadd.s32 %s175, %s179
          %s181 = smul.addr %s180, 128
          %s182 = scalar_lea.hbm %s0, %s181
          %s184 = sshll.u32 %s174, 4
          %s185 = int_to_ptr.vmem [resolvable:$true] %s184
          %187 = dma.hbm_to_vmem [thread:$0]  %s182, 256, %s185, %s171
        $region28: #{tpu_custom_call.1} parent=23 // pred_fallthru
          _
      $region24: #{tpu_custom_call.1} parent=5 // pred_fallthru
        _
      %p188 = scmp.le.s32.totalorder 1, %s16
      %p189 = scmp.lt.s32.totalorder %s16, 3
      %p190 = pnand %p188, %p189
      %p191 = pneg %p190
      // Predicated region
      $region29: #{tpu_custom_call.1} parent=5 // pred_check
        _
      $region30: #{tpu_custom_call.1} parent=5 // pred_check_branch
        %193 = sbr.rel (%p190) target = $region32
      $region31: #{tpu_custom_call.1} parent=5 // pred_region
        %s194 = ssub.s32 %s16, 1
        %s195 = sand.u32 %s43, 1
        %s196 = scalar_lea.sflag [#allocation3], %s195
        %s197 = sand.u32 %s43, 1
        %s198 = smul.addr %s197, 16
        %s199 = scalar_lea.vmem [#allocation2], %s198
        // Predicated region
        $region33: #{tpu_custom_call.1} parent=31 // pred_check
          %p200 = pneg %p56
        $region34: #{tpu_custom_call.1} parent=31 // pred_check_branch
          %202 = sbr.rel (%p200) target = $region36
        $region35: #{tpu_custom_call.1} parent=31 // pred_region
          %203 = dma.done %s196, 256
        $region36: #{tpu_custom_call.1} parent=31 // pred_fallthru
          _
        // Predicated region
        $region37: #{tpu_custom_call.1} parent=31 // pred_check
          %p204 = pneg %p82
        $region38: #{tpu_custom_call.1} parent=31 // pred_check_branch
          %206 = sbr.rel (%p204) target = $region40
        $region39: #{tpu_custom_call.1} parent=31 // pred_region
          %207 = dma.done [#allocation6], 2048
        $region40: #{tpu_custom_call.1} parent=31 // pred_fallthru
          _
        %s208 = sand.u32 %s43, 1
        %s209 = scalar_lea.sflag [#allocation3], %s208
        %s210 = sand.u32 %s43, 1
        %s211 = smul.addr %s210, 16
        %s212 = scalar_lea.vmem [#allocation2], %s211
        %p213 = pneg %p56
        %p214 = pneg %p53
        %p215 = pneg %p82
        %p216 = pneg %p79
        %p217 = pneg %p103
        %p218 = pneg %p100
        %p219 = pneg %p129
        %p220 = pneg %p126
        %s221 = sand.u32 %s116, 1
        %s222 = scalar_lea.sflag [#allocation4], %s221
        %s223 = sand.u32 %s116, 1
        %s224 = smul.addr %s223, 8
        %s225 = scalar_lea.vmem [#allocation7], %s224
        %s226 = smul.u32 2, %s26
        %s227 = smul.u32 32, %s26
        %p229 = scmp.eq.s32.totalorder %s26, 0
        // Predicated region
        $region41: #{tpu_custom_call.1} parent=31 // pred_check
          %p230 = pneg %p229
        $region42: #{tpu_custom_call.1} parent=31 // pred_check_branch
          %232 = sbr.rel (%p230) target = $region44
        $region43: #{tpu_custom_call.1} parent=31 // pred_region
          %233 = vst [vmem:[%s225] sm:$0xff] 0.0
        $region44: #{tpu_custom_call.1} parent=31 // pred_fallthru
          _
        %v234 = vld [vmem:[%s199] sm:$0xff]
        %v235 = vld [vmem:[%s199 + $0x8] sm:$0xff]
        %v236 = vpack.c.bf16 %v234, %v234
        %v237 = vpack.c.bf16 %v235, %v235
        %v238 = vld [vmem:[%s225] sm:$0xff]
        %v239 = vld [vmem:[#allocation5] sm:$0xf]
        %v240 = vld [vmem:[#allocation5 + $0x4] sm:$0xf]
        %v241 = vld [vmem:[#allocation5 + $0x8] sm:$0xf]
        %v242 = vld [vmem:[#allocation5 + $0xc] sm:$0xf]
        %v243 = vld [vmem:[#allocation5 + $0x10] sm:$0xf]
        %v244 = vld [vmem:[#allocation5 + $0x14] sm:$0xf]
        %v245 = vld [vmem:[#allocation5 + $0x18] sm:$0xf]
        %v246 = vld [vmem:[#allocation5 + $0x1c] sm:$0xf]
        %v247 = vld [vmem:[#allocation5 + $0x20] sm:$0xf]
        %v248 = vld [vmem:[#allocation5 + $0x24] sm:$0xf]
        %v249 = vld [vmem:[#allocation5 + $0x28] sm:$0xf]
        %v250 = vld [vmem:[#allocation5 + $0x2c] sm:$0xf]
        %v251 = vld [vmem:[#allocation5 + $0x30] sm:$0xf]
        %v252 = vld [vmem:[#allocation5 + $0x34] sm:$0xf]
        %v253 = vld [vmem:[#allocation5 + $0x38] sm:$0xf]
        %v254 = vld [vmem:[#allocation5 + $0x3c] sm:$0xf]
        %v255 = vld [vmem:[#allocation5 + $0x40] sm:$0xf]
        %v256 = vld [vmem:[#allocation5 + $0x44] sm:$0xf]
        %v257 = vld [vmem:[#allocation5 + $0x48] sm:$0xf]
        %v258 = vld [vmem:[#allocation5 + $0x4c] sm:$0xf]
        %v259 = vld [vmem:[#allocation5 + $0x50] sm:$0xf]
        %v260 = vld [vmem:[#allocation5 + $0x54] sm:$0xf]
        %v261 = vld [vmem:[#allocation5 + $0x58] sm:$0xf]
        %v262 = vld [vmem:[#allocation5 + $0x5c] sm:$0xf]
        %v263 = vld [vmem:[#allocation5 + $0x60] sm:$0xf]
        %v264 = vld [vmem:[#allocation5 + $0x64] sm:$0xf]
        %v265 = vld [vmem:[#allocation5 + $0x68] sm:$0xf]
        %v266 = vld [vmem:[#allocation5 + $0x6c] sm:$0xf]
        %v267 = vld [vmem:[#allocation5 + $0x70] sm:$0xf]
        %v268 = vld [vmem:[#allocation5 + $0x74] sm:$0xf]
        %v269 = vld [vmem:[#allocation5 + $0x78] sm:$0xf]
        %v270 = vld [vmem:[#allocation5 + $0x7c] sm:$0xf]
        %v303 = vunpack.c.l.b16 %v239
        %v304 = vunpack.c.l.b16 %v240
        %v305 = vunpack.c.l.b16 %v241
        %v306 = vunpack.c.l.b16 %v242
        %v307 = vunpack.c.l.b16 %v243
        %v308 = vunpack.c.l.b16 %v244
        %v309 = vunpack.c.l.b16 %v245
        %v310 = vunpack.c.l.b16 %v246
        %v311 = vunpack.c.l.b16 %v247
        %v312 = vunpack.c.l.b16 %v248
        %v313 = vunpack.c.l.b16 %v249
        %v314 = vunpack.c.l.b16 %v250
        %v315 = vunpack.c.l.b16 %v251
        %v316 = vunpack.c.l.b16 %v252
        %v317 = vunpack.c.l.b16 %v253
        %v318 = vunpack.c.l.b16 %v254
        %v319 = vunpack.c.l.b16 %v255
        %v320 = vunpack.c.l.b16 %v256
        %v321 = vunpack.c.l.b16 %v257
        %v322 = vunpack.c.l.b16 %v258
        %v323 = vunpack.c.l.b16 %v259
        %v324 = vunpack.c.l.b16 %v260
        %v325 = vunpack.c.l.b16 %v261
        %v326 = vunpack.c.l.b16 %v262
        %v327 = vunpack.c.l.b16 %v263
        %v328 = vunpack.c.l.b16 %v264
        %v329 = vunpack.c.l.b16 %v265
        %v330 = vunpack.c.l.b16 %v266
        %v331 = vunpack.c.l.b16 %v267
        %v332 = vunpack.c.l.b16 %v268
        %v333 = vunpack.c.l.b16 %v269
        %v334 = vunpack.c.l.b16 %v270
        %v335 = vpack.c.b16 %v304, %v303
        %v336 = vpack.c.b16 %v306, %v305
        %v337 = vpack.c.b16 %v308, %v307
        %v338 = vpack.c.b16 %v310, %v309
        %v339 = vpack.c.b16 %v312, %v311
        %v340 = vpack.c.b16 %v314, %v313
        %v341 = vpack.c.b16 %v316, %v315
        %v342 = vpack.c.b16 %v318, %v317
        %v343 = vpack.c.b16 %v320, %v319
        %v344 = vpack.c.b16 %v322, %v321
        %v345 = vpack.c.b16 %v324, %v323
        %v346 = vpack.c.b16 %v326, %v325
        %v347 = vpack.c.b16 %v328, %v327
        %v348 = vpack.c.b16 %v330, %v329
        %v349 = vpack.c.b16 %v332, %v331
        %v350 = vpack.c.b16 %v334, %v333
        %367 = vmatprep.subr.bf16.mxu0 0
        %368 = vmatpush1.bf16.msra.mxu0 %v335
        %369 = vmatprep.subr.bf16.mxu0 0
        %370 = vmatpush1.bf16.msra.mxu0 %v336
        %371 = vmatprep.subr.bf16.mxu0 0
        %372 = vmatpush1.bf16.msra.mxu0 %v337
        %373 = vmatprep.subr.bf16.mxu0 0
        %374 = vmatpush1.bf16.msra.mxu0 %v338
        %375 = vmatprep.subr.bf16.mxu0 0
        %376 = vmatpush1.bf16.msra.mxu0 %v339
        %377 = vmatprep.subr.bf16.mxu0 0
        %378 = vmatpush1.bf16.msra.mxu0 %v340
        %379 = vmatprep.subr.bf16.mxu0 0
        %380 = vmatpush1.bf16.msra.mxu0 %v341
        %381 = vmatprep.subr.bf16.mxu0 0
        %382 = vmatpush1.bf16.msra.mxu0 %v342
        %383 = vmatprep.subr.bf16.mxu0 0
        %384 = vmatpush1.bf16.msra.mxu0 %v343
        %385 = vmatprep.subr.bf16.mxu0 0
        %386 = vmatpush1.bf16.msra.mxu0 %v344
        %387 = vmatprep.subr.bf16.mxu0 0
        %388 = vmatpush1.bf16.msra.mxu0 %v345
        %389 = vmatprep.subr.bf16.mxu0 0
        %390 = vmatpush1.bf16.msra.mxu0 %v346
        %391 = vmatprep.subr.bf16.mxu0 0
        %392 = vmatpush1.bf16.msra.mxu0 %v347
        %393 = vmatprep.subr.bf16.mxu0 0
        %394 = vmatpush1.bf16.msra.mxu0 %v348
        %395 = vmatprep.subr.bf16.mxu0 0
        %396 = vmatpush1.bf16.msra.mxu0 %v349
        %397 = vmatprep.subr.bf16.mxu0 0
        %398 = vmatpush1.bf16.msra.mxu0 %v350
        %399 = vmatprep.mubr.bf16.mxu0 %v237
        %400 = vmatmul.mubr.bf16.gmra.mrb[0].mxu0 %v236
        %v401 = vpop.f32.mrb[0].mxu0
        %v402 = vadd.f32 0.0, %v401
        %v403 = vpop.f32.mrb[0].mxu0
        %v404 = vpop.f32.mrb[0].mxu0
        %v405 = vpop.f32.mrb[0].mxu0
        %406 = vdwg.mxu0
        %v407 = vadd.f32 %v238, %v402
        %408 = vst [vmem:[%s225] sm:$0xff] %v407
        // Predicated region
        $region45: #{tpu_custom_call.1} parent=31 // pred_check
          %p409 = pneg %p229
        $region46: #{tpu_custom_call.1} parent=31 // pred_check_branch
          %411 = sbr.rel (%p409) target = $region48
        $region47: #{tpu_custom_call.1} parent=31 // pred_region
          %v412 = vld [vmem:[%s225] sm:$0xff]
          %v413 = vld [vmem:[%s2] sm:$0x1]
          %v415 = vlaneseq
          %v416 = vshrl.u32 %v415, 7
          %v417 = vsub.s32 0, %v416
          %v418 = vrot.slane %v413, %v417
          %v420 = vadd.f32 %v412, %v418
          %v421 = vlaneseq
          %v422 = vand.u32 %v421, 127
          %vm423 = vcmp.lt.s32.totalorder %v422, 4
          %v424 = vsel %vm423, %v420, -inf
          %425 = vmax.xlane.f32.xlu0 %v424
          %v426 = vpop.xlane.xlu0 %425
          %v427 = vsub.f32 %v424, %v426
          %v428 = vmul.f32 %v427, 1.442695
          %v429 = vpow.pop %v428
          %430 = vadd.xlane.f32.xlu0 %v429
          %v431 = vpop.xlane.xlu0 %430
          %v432 = vlog2.pop %v431
          %v433 = vmul.f32 %v432, 0.6931472
          %v434 = vsub.f32 %v427, %v433
          %435 = vst [vmem:[%s225] sm:$0xff] %v434
        $region48: #{tpu_custom_call.1} parent=31 // pred_fallthru
          _
        %s436 = sand.u32 %s116, 1
        %s437 = scalar_lea.sflag [#allocation4], %s436
        %s438 = sand.u32 %s116, 1
        %s439 = smul.addr %s438, 8
        %s440 = scalar_lea.vmem [#allocation7], %s439
        // Predicated region
        $region49: #{tpu_custom_call.1} parent=31 // pred_check
          %p441 = pneg %p126
        $region50: #{tpu_custom_call.1} parent=31 // pred_check_branch
          %443 = sbr.rel (%p441) target = $region52
        $region51: #{tpu_custom_call.1} parent=31 // pred_region
          %s445 = ssub.s32 128, 128
          %446 = vsyncadd %s437, %s445
          %s447 = smul.addr %s25, 128
          %s448 = scalar_lea.hbm %s3, %s447
          %s450 = sshll.u32 %s440, 4
          %s451 = int_to_ptr.vmem [resolvable:$true] %s450
          %453 = dma.vmem_to_hbm [thread:$0]  %s451, 128, %s448, %s437
        $region52: #{tpu_custom_call.1} parent=31 // pred_fallthru
          _
      $region32: #{tpu_custom_call.1} parent=5 // pred_fallthru
        _
      %p454 = scmp.le.s32.totalorder 2, %s16
      // Predicated region
      $region53: #{tpu_custom_call.1} parent=5 // pred_check
        %p455 = pneg %p454
      $region54: #{tpu_custom_call.1} parent=5 // pred_check_branch
        %457 = sbr.rel (%p455) target = $region56
      $region55: #{tpu_custom_call.1} parent=5 // pred_region
        %s458 = ssub.s32 %s16, 2
        // Predicated region
        $region57: #{tpu_custom_call.1} parent=55 // pred_check
          %p459 = pneg %p132
        $region58: #{tpu_custom_call.1} parent=55 // pred_check_branch
          %461 = sbr.rel (%p459) target = $region60
        $region59: #{tpu_custom_call.1} parent=55 // pred_region
          %s462 = sand.u32 %s117, 1
          %s463 = scalar_lea.sflag [#allocation4], %s462
          %s464 = sand.u32 %s117, 1
          %s465 = smul.addr %s464, 8
          %s466 = scalar_lea.vmem [#allocation7], %s465
          %467 = dma.done %s463, 128
        $region60: #{tpu_custom_call.1} parent=55 // pred_fallthru
          _
      $region56: #{tpu_custom_call.1} parent=5 // pred_fallthru
        _
    $region6: #{tpu_custom_call.1} parent=1 // loop_footer
      %s20 = sadd.s32 1, %s16
    $region7: #{tpu_custom_call.1} parent=1 // loop_footer_branch
      %15 = sbr.rel target = $region3
    $region8: #{tpu_custom_call.1} parent=1 // loop_exit
      _
    %468 = vsyncpa [#allocation3], 1
    %s469 = scalar_lea.sflag [#allocation3], 1
    %470 = vsyncpa %s469, 1
    %471 = vsyncpa [#allocation6], 1
    %472 = vsyncpa [#allocation4], 1
    %s473 = scalar_lea.sflag [#allocation4], 1
    %474 = vsyncpa %s473, 1

</llo_original>
